<compile_context>
chip_gen: v6e
topology: v6e:2x2x1
jax: 0.10.0
libtpu: 0.0.40
codegen_flags: <defaults>
</compile_context>

<pallas_src>
import math

import jax
import jax.numpy as jnp
from jax.experimental import pallas as pl
from jax.experimental.pallas import tpu as pltpu


GATE_LANES = 128   # lane-dense width for the per-step stop-gate output
_P = 10.0
_EPS = 1e-20


# ----------------------------------------------------------------------------
# Fused StopControl recurrence:
#   for t in range(T): h,c = LSTMCell(x_t, (h,c)); gate_t = sigmoid(w_out.h + b)
# ----------------------------------------------------------------------------
def _stop_control_seq_kernel(x_ref, h0_ref, c0_ref, wih_ref, whh_ref, b_ref,
                             wout_ref, bout_ref,
                             gate_ref, h_ref, c_ref):
    t = pl.program_id(0)

    # h_ref / c_ref are outputs with a constant block index -> they stay
    # resident in VMEM across grid steps and act as the recurrent state.
    @pl.when(t == 0)
    def _():
        h_ref[...] = h0_ref[...]
        c_ref[...] = c0_ref[...]

    x = x_ref[0]          # (B, I)
    h = h_ref[...]        # (B, Hp)
    c = c_ref[...]        # (B, Hp)
    Hp = h.shape[-1]

    # gates = x @ W_ih^T + h @ W_hh^T + (b_ih + b_hh)   -> (B, 4*Hp)
    gates = (jnp.dot(x, wih_ref[...], preferred_element_type=jnp.float32)
             + jnp.dot(h, whh_ref[...], preferred_element_type=jnp.float32)
             + b_ref[...])

    # PyTorch LSTMCell gate order: input, forget, cell(g), output.
    # Hp is a multiple of 128, so every slice is 128-lane aligned.
    i_g = jax.nn.sigmoid(gates[:, 0 * Hp:1 * Hp])
    f_g = jax.nn.sigmoid(gates[:, 1 * Hp:2 * Hp])
    g_g = jnp.tanh(gates[:, 2 * Hp:3 * Hp])
    o_g = jax.nn.sigmoid(gates[:, 3 * Hp:4 * Hp])

    c_new = f_g * c + i_g * g_g
    h_new = o_g * jnp.tanh(c_new)

    h_ref[...] = h_new
    c_ref[...] = c_new

    # Output layer: N=1 matmul replaced by VPU multiply + cross-lane (XLU)
    # reduction; scalar bias comes from SMEM.
    logit = jnp.sum(h_new * wout_ref[...], axis=-1, keepdims=True) + bout_ref[0, 0]
    gate = jax.nn.sigmoid(logit)                                   # (B, 1)
    # Lane-dense store: broadcast the scalar gate across 128 lanes.
    gate_ref[0] = jnp.broadcast_to(gate, gate_ref.shape[1:])


def prepare_stop_control_params(params, lane=GATE_LANES):
    """One-time weight preprocessing (hoisted out of the per-call path).

    Transposes W_ih / W_hh / w_out, fuses b_ih + b_hh, and pads the hidden
    dimension of every gate block up to a multiple of `lane` (128). Padded
    rows/cols/biases are zero, so the padded lanes never affect real outputs.
    """
    f32 = jnp.float32
    H = params["h_0"].shape[0]
    I = params["w_ih"].shape[1]
    Hp = ((H + lane - 1) // lane) * lane

    def pad_gate_cols(w_t):  # (in, 4H) -> (in, 4*Hp), gate blocks lane-aligned
        out = jnp.zeros((w_t.shape[0], 4 * Hp), f32)
        for k in range(4):
            out = out.at[:, k * Hp:k * Hp + H].set(w_t[:, k * H:(k + 1) * H])
        return out

    wih_t = pad_gate_cols(params["w_ih"].astype(f32).T)                  # (I, 4Hp)
    whh_t = jnp.zeros((Hp, 4 * Hp), f32).at[:H].set(
        pad_gate_cols(params["w_hh"].astype(f32).T))                     # (Hp, 4Hp)
    b = pad_gate_cols((params["b_ih"] + params["b_hh"]).astype(f32)[None, :])
    wout = jnp.zeros((1, Hp), f32).at[:, :H].set(params["w_out"].astype(f32))
    bout = params["b_out"].astype(f32).reshape(1, 1)
    h0 = jnp.zeros((Hp,), f32).at[:H].set(params["h_0"].astype(f32))
    c0 = jnp.zeros((Hp,), f32).at[:H].set(params["c_0"].astype(f32))
    return dict(wih_t=wih_t, whh_t=whh_t, b=b, wout=wout, bout=bout,
                h0=h0, c0=c0, H=H, Hp=Hp, I=I)


def stop_control_sequence(xs, hx, prep):
    """Run T StopControl steps in a single fused pallas_call.

    xs: (T, B, input_size); hx: None or (h, c) each (B, H).
    Returns (gates (T, B), (h_T, c_T)) with h/c shaped (B, H) like the module.
    """
    T, B, I = xs.shape
    H, Hp = prep["H"], prep["Hp"]

    if hx is None:
        h = jnp.broadcast_to(prep["h0"][None, :], (B, Hp))
        c = jnp.broadcast_to(prep["c0"][None, :], (B, Hp))
    else:
        h = jnp.zeros((B, Hp), jnp.float32).at[:, :H].set(hx[0].astype(jnp.float32))
        c = jnp.zeros((B, Hp), jnp.float32).at[:, :H].set(hx[1].astype(jnp.float32))

    res = lambda t: (0, 0)  # constant block index -> VMEM-resident across steps

    # NOTE (v7x): if multiple independent candidate models are evaluated, an
    # extra leading "parallel" grid axis over models would use both TensorCores;
    # here independent work is batched along B instead.
    gates, h_out, c_out = pl.pallas_call(
        _stop_control_seq_kernel,
        grid=(T,),
        in_specs=[
            pl.BlockSpec((1, B, I), lambda t: (t, 0, 0)),        # per-step input
            pl.BlockSpec((B, Hp), res),                          # h0
            pl.BlockSpec((B, Hp), res),                          # c0
            pl.BlockSpec((I, 4 * Hp), res),                      # W_ih^T (padded)
            pl.BlockSpec((Hp, 4 * Hp), res),                     # W_hh^T (padded)
            pl.BlockSpec((1, 4 * Hp), res),                      # b_ih + b_hh
            pl.BlockSpec((1, Hp), res),                          # w_out row
            pl.BlockSpec(memory_space=pltpu.MemorySpace.SMEM),   # b_out scalar
        ],
        out_specs=(
            pl.BlockSpec((1, B, GATE_LANES), lambda t: (t, 0, 0)),  # lane-dense gate
            pl.BlockSpec((B, Hp), res),                             # h (VMEM carry)
            pl.BlockSpec((B, Hp), res),                             # c (VMEM carry)
        ),
        out_shape=(
            jax.ShapeDtypeStruct((T, B, GATE_LANES), jnp.float32),
            jax.ShapeDtypeStruct((B, Hp), jnp.float32),
            jax.ShapeDtypeStruct((B, Hp), jnp.float32),
        ),
        compiler_params=pltpu.CompilerParams(
            dimension_semantics=("arbitrary",)),
    )(xs.astype(jnp.float32), h, c,
      prep["wih_t"], prep["whh_t"], prep["b"], prep["wout"], prep["bout"])

    return gates[:, :, 0], (h_out[:, :H], c_out[:, :H])


def stop_control_forward(inputs, hx, prep):
    """Single-step API matching StopControl.forward (T=1 case of the fused kernel)."""
    gates, hc = stop_control_sequence(inputs[None], hx, prep)
    # torch.sigmoid(self.output_layer(h).squeeze())
    return jnp.squeeze(gates[0]), hc


# ----------------------------------------------------------------------------
# GradientModel.smooth (elementwise, tiled)
# ----------------------------------------------------------------------------
def _smooth_kernel(w_ref, logw_ref, sign_ref):
    w = w_ref[...]
    w_abs = jnp.abs(w)
    less = (w_abs < math.exp(-_P)).astype(jnp.float32)
    noless = 1.0 - less
    logw_ref[...] = less * (-1.0) + noless * (jnp.log(w_abs + _EPS) * (1.0 / _P))
    sign_ref[...] = less * math.exp(_P) * w + noless * jnp.sign(w)


def smooth(weight):
    """Pallas version of GradientModel.smooth -> (log_weight, sign).

    Flattens, pads to a lane-dense (rows, 512) layout and tiles the rows so
    the per-step VMEM footprint stays small (fits v7x's 64 MiB VMEM for
    arbitrarily large weight tensors).
    """
    orig_shape = weight.shape
    flat = weight.astype(jnp.float32).reshape(-1)
    n = flat.shape[0]

    LANES = 512
    rows_needed = -(-n // LANES)
    row_block = min(256, ((rows_needed + 7) // 8) * 8)          # multiple of 8
    total_rows = ((rows_needed + row_block - 1) // row_block) * row_block
    padded = total_rows * LANES
    if padded != n:
        flat = jnp.pad(flat, (0, padded - n))
    x2 = flat.reshape(total_rows, LANES)

    blk = pl.BlockSpec((row_block, LANES), lambda i: (i, 0))
    logw, sign = pl.pallas_call(
        _smooth_kernel,
        grid=(total_rows // row_block,),
        in_specs=[blk],
        out_specs=(blk, blk),
        out_shape=(jax.ShapeDtypeStruct((total_rows, LANES), jnp.float32),
                   jax.ShapeDtypeStruct((total_rows, LANES), jnp.float32)),
        compiler_params=pltpu.CompilerParams(
            dimension_semantics=("parallel",),
            vmem_limit_bytes=32 * 1024 * 1024),
    )(x2)

    logw = logw.reshape(-1)[:n].reshape(orig_shape)
    sign = sign.reshape(-1)[:n].reshape(orig_shape)
    return logw, sign


# ----------------------------------------------------------------------------
# Driver
# ----------------------------------------------------------------------------
if __name__ == "__main__":
    key = jax.random.PRNGKey(0)

    # Sizes implied by __init__ (flexible_step=True, hidden_input=True):
    #   stop_input_size = len(learned_params) * lstm_hidden
    #   hidden_size     = 2 * stop_input_size
    n_learned_params = 2
    lstm_hidden = 16
    input_size = n_learned_params * lstm_hidden       # 32
    hidden_size = 2 * input_size                      # 64
    B = 8                                             # batched candidate states
    T = 6                                             # fused recurrent steps

    ks = jax.random.split(key, 10)
    params = {
        "w_ih": 0.1 * jax.random.normal(ks[0], (4 * hidden_size, input_size), jnp.float32),
        "w_hh": 0.1 * jax.random.normal(ks[1], (4 * hidden_size, hidden_size), jnp.float32),
        "b_ih": 0.1 * jax.random.normal(ks[2], (4 * hidden_size,), jnp.float32),
        "b_hh": 0.1 * jax.random.normal(ks[3], (4 * hidden_size,), jnp.float32),
        "w_out": 0.1 * jax.random.normal(ks[4], (1, hidden_size), jnp.float32),
        "b_out": jnp.zeros((1,), jnp.float32),         # output_layer.bias.data.fill_(0.)
        "h_0": jax.random.normal(ks[5], (hidden_size,), jnp.float32),
        "c_0": jax.random.normal(ks[6], (hidden_size,), jnp.float32),
    }

    # One-time preprocessing (hoisted out of the per-step path).
    prep = prepare_stop_control_params(params)

    # In the real module each step's input is built from the meta-optimizer's
    # LSTM hidden states (data-dependent); here a precomputed sequence stands in.
    xs = 0.5 * jax.random.normal(ks[7], (T, B, input_size), jnp.float32)

    # Fused T-step recurrence (hx=None -> starts from (h_0, c_0)).
    gates, (hT, cT) = stop_control_sequence(xs, None, prep)
    jax.block_until_ready((gates, hT, cT))

    # Single-step continuation reusing the returned hidden state (self.stop_hx).
    x_next = 0.5 * jax.random.normal(ks[8], (B, input_size), jnp.float32)
    gate_next, (h_next, c_next) = stop_control_forward(x_next, (hT, cT), prep)
    jax.block_until_ready((gate_next, h_next, c_next))

    # ---- pure-JAX reference (exact PyTorch LSTMCell + Linear + sigmoid math) ----
    def ref_step(x, h, c):
        g_all = (x @ params["w_ih"].T + params["b_ih"]
                 + h @ params["w_hh"].T + params["b_hh"])
        i, f, g, o = jnp.split(g_all, 4, axis=-1)
        i, f, o = jax.nn.sigmoid(i), jax.nn.sigmoid(f), jax.nn.sigmoid(o)
        g = jnp.tanh(g)
        c_new = f * c + i * g
        h_new = o * jnp.tanh(c_new)
        gate = jax.nn.sigmoid(h_new @ params["w_out"].T + params["b_out"])[:, 0]
        return gate, h_new, c_new

    h_r = jnp.broadcast_to(params["h_0"][None, :], (B, hidden_size))
    c_r = jnp.broadcast_to(params["c_0"][None, :], (B, hidden_size))
    gates_ref = []
    for t in range(T):
        g_r, h_r, c_r = ref_step(xs[t], h_r, c_r)
        gates_ref.append(g_r)
    gates_ref = jnp.stack(gates_ref)

    assert jnp.allclose(gates, gates_ref, atol=1e-4), "stop gate sequence mismatch"
    assert jnp.allclose(hT, h_r, atol=1e-4), "h_T mismatch"
    assert jnp.allclose(cT, c_r, atol=1e-4), "c_T mismatch"

    g2_ref, h2_ref, c2_ref = ref_step(x_next, hT, cT)
    assert jnp.allclose(gate_next, g2_ref, atol=1e-4), "continuation gate mismatch"
    assert jnp.allclose(h_next, h2_ref, atol=1e-4), "continuation h mismatch"
    assert jnp.allclose(c_next, c2_ref, atol=1e-4), "continuation c mismatch"

    # ---- smooth: tiny stats vector (hidden_input=False path) + a larger tensor ----
    def smooth_ref(w):
        w_abs = jnp.abs(w)
        less = (w_abs < math.exp(-_P)).astype(jnp.float32)
        noless = 1.0 - less
        return (less * -1.0 + noless * jnp.log(w_abs + _EPS) / _P,
                less * math.exp(_P) * w + noless * jnp.sign(w))

    grad_stats = jnp.abs(jax.random.normal(key, (1, n_learned_params + 1), jnp.float32))
    lw, sg = smooth(grad_stats)
    big_w = 0.5 * jax.random.normal(ks[9], (513, 300), jnp.float32)
    lw_big, sg_big = smooth(big_w)
    jax.block_until_ready((lw, sg, lw_big, sg_big))

    lw_r, sg_r = smooth_ref(grad_stats)
    lwb_r, sgb_r = smooth_ref(big_w)
    assert jnp.allclose(lw, lw_r, atol=1e-6), "smooth log mismatch (small)"
    assert jnp.allclose(sg, sg_r, atol=1e-6), "smooth sign mismatch (small)"
    assert jnp.allclose(lw_big, lwb_r, atol=1e-6), "smooth log mismatch (large)"
    assert jnp.allclose(sg_big, sgb_r, atol=1e-6), "smooth sign mismatch (large)"

    # TODO(synk): step_forward's autograd over the abstract recommender model,
    # random negative sampling, and the stochastic early-stop control flow are
    # host / framework logic with no Pallas kernel equivalent.
    print("KERNEL_OK")
</pallas_src>

<mosaic_0001>
module attributes {stable_mosaic.version = 11 : i64} {
  func.func @_stop_control_seq_kernel(%arg0: i32, %arg1: memref<1x8x32xf32, #tpu.memory_space<vmem>>, %arg2: memref<8x128xf32, #tpu.memory_space<vmem>>, %arg3: memref<8x128xf32, #tpu.memory_space<vmem>>, %arg4: memref<32x512xf32, #tpu.memory_space<vmem>>, %arg5: memref<128x512xf32, #tpu.memory_space<vmem>>, %arg6: memref<1x512xf32, #tpu.memory_space<vmem>>, %arg7: memref<1x128xf32, #tpu.memory_space<vmem>>, %arg8: memref<1x1xf32, #tpu.memory_space<smem>>, %arg9: memref<1x8x128xf32, #tpu.memory_space<vmem>>, %arg10: memref<8x128xf32, #tpu.memory_space<vmem>>, %arg11: memref<8x128xf32, #tpu.memory_space<vmem>>) attributes {dimension_semantics = [#tpu.dimension_semantics<arbitrary>], iteration_bounds = array<i64: 6>, scalar_prefetch = 0 : i64, scratch_operands = 0 : i64, tpu.core_type = #tpu.core_type<tc>, window_params = [{transform_indices = @transform_0, window_bounds = array<i64: 1, 8, 32>}, {pipeline_mode = #tpu.pipeline_mode<synchronous>, transform_indices = @transform_1, window_bounds = array<i64: 8, 128>}, {pipeline_mode = #tpu.pipeline_mode<synchronous>, transform_indices = @transform_2, window_bounds = array<i64: 8, 128>}, {pipeline_mode = #tpu.pipeline_mode<synchronous>, transform_indices = @transform_3, window_bounds = array<i64: 32, 512>}, {pipeline_mode = #tpu.pipeline_mode<synchronous>, transform_indices = @transform_4, window_bounds = array<i64: 128, 512>}, {pipeline_mode = #tpu.pipeline_mode<synchronous>, transform_indices = @transform_5, window_bounds = array<i64: 1, 512>}, {pipeline_mode = #tpu.pipeline_mode<synchronous>, transform_indices = @transform_6, window_bounds = array<i64: 1, 128>}, {transform_indices = @transform_7, window_bounds = array<i64: 1, 1>}, {transform_indices = @transform_8, window_bounds = array<i64: 1, 8, 128>}, {pipeline_mode = #tpu.pipeline_mode<synchronous>, transform_indices = @transform_9, window_bounds = array<i64: 8, 128>}, {pipeline_mode = #tpu.pipeline_mode<synchronous>, transform_indices = @transform_10, window_bounds = array<i64: 8, 128>}]} {
    %c0_i32 = arith.constant 0 : i32
    %0 = arith.cmpi eq, %arg0, %c0_i32 : i32
    %1 = arith.extui %0 : i1 to i32
    %c0_i32_0 = arith.constant 0 : i32
    %2 = arith.cmpi ne, %1, %c0_i32_0 : i32
    scf.if %2 {
      %c0_30 = arith.constant 0 : index
      %c0_31 = arith.constant 0 : index
      %60 = vector.load %arg2[%c0_30, %c0_31] : memref<8x128xf32, #tpu.memory_space<vmem>>, vector<8x128xf32>
      %c0_32 = arith.constant 0 : index
      %c0_33 = arith.constant 0 : index
      %61 = vector.load %arg10[%c0_32, %c0_33] : memref<8x128xf32, #tpu.memory_space<vmem>>, vector<8x128xf32>
      tpu.vector_store %arg10[%c0_32, %c0_33], %60 {strides = array<i32>} : memref<8x128xf32, #tpu.memory_space<vmem>>, vector<8x128xf32>,
      %c0_34 = arith.constant 0 : index
      %c0_35 = arith.constant 0 : index
      %62 = vector.load %arg3[%c0_34, %c0_35] : memref<8x128xf32, #tpu.memory_space<vmem>>, vector<8x128xf32>
      %c0_36 = arith.constant 0 : index
      %c0_37 = arith.constant 0 : index
      %63 = vector.load %arg11[%c0_36, %c0_37] : memref<8x128xf32, #tpu.memory_space<vmem>>, vector<8x128xf32>
      tpu.vector_store %arg11[%c0_36, %c0_37], %62 {strides = array<i32>} : memref<8x128xf32, #tpu.memory_space<vmem>>, vector<8x128xf32>,
    } else {
    }
    %c0 = arith.constant 0 : index
    %c0_1 = arith.constant 0 : index
    %c0_2 = arith.constant 0 : index
    %3 = vector.load %arg1[%c0, %c0_1, %c0_2] : memref<1x8x32xf32, #tpu.memory_space<vmem>>, vector<1x8x32xf32>
    %4 = vector.shape_cast %3 : vector<1x8x32xf32> to vector<8x32xf32>
    %c0_3 = arith.constant 0 : index
    %c0_4 = arith.constant 0 : index
    %5 = vector.load %arg10[%c0_3, %c0_4] : memref<8x128xf32, #tpu.memory_space<vmem>>, vector<8x128xf32>
    %c0_5 = arith.constant 0 : index
    %c0_6 = arith.constant 0 : index
    %6 = vector.load %arg11[%c0_5, %c0_6] : memref<8x128xf32, #tpu.memory_space<vmem>>, vector<8x128xf32>
    %c0_7 = arith.constant 0 : index
    %c0_8 = arith.constant 0 : index
    %7 = vector.load %arg4[%c0_7, %c0_8] : memref<32x512xf32, #tpu.memory_space<vmem>>, vector<32x512xf32>
    %cst = arith.constant dense<0.000000e+00> : vector<8x512xf32>
    %8 = tpu.matmul %4, %7, %cst {dimension_numbers = #tpu.dot_dimension_numbers<[1], [0], [0], [1], [0, 0, 1, 1], [], []>} : vector<8x32xf32>, vector<32x512xf32>, vector<8x512xf32> -> vector<8x512xf32>
    %c0_9 = arith.constant 0 : index
    %c0_10 = arith.constant 0 : index
    %9 = vector.load %arg5[%c0_9, %c0_10] : memref<128x512xf32, #tpu.memory_space<vmem>>, vector<128x512xf32>
    %cst_11 = arith.constant dense<0.000000e+00> : vector<8x512xf32>
    %10 = tpu.matmul %5, %9, %cst_11 {dimension_numbers = #tpu.dot_dimension_numbers<[1], [0], [0], [1], [0, 0, 1, 1], [], []>} : vector<8x128xf32>, vector<128x512xf32>, vector<8x512xf32> -> vector<8x512xf32>
    %11 = arith.addf %8, %10 : vector<8x512xf32>
    %c0_12 = arith.constant 0 : index
    %c0_13 = arith.constant 0 : index
    %12 = vector.load %arg6[%c0_12, %c0_13] : memref<1x512xf32, #tpu.memory_space<vmem>>, vector<1x512xf32>
    %13 = vector.broadcast %12 : vector<1x512xf32> to vector<8x512xf32>
    %14 = arith.addf %11, %13 : vector<8x512xf32>
    %15 = vector.extract_strided_slice %14 {offsets = [0, 0], sizes = [8, 128], strides = [1, 1]} : vector<8x512xf32> to vector<8x128xf32>
    %16 = arith.negf %15 : vector<8x128xf32>
    %17 = math.exp %16 : vector<8x128xf32>
    %cst_14 = arith.constant 1.000000e+00 : f32
    %18 = vector.broadcast %cst_14 : f32 to vector<8x128xf32>
    %19 = arith.addf %18, %17 : vector<8x128xf32>
    %20 = arith.divf %18, %19 : vector<8x128xf32>
    %21 = vector.extract_strided_slice %14 {offsets = [0, 128], sizes = [8, 128], strides = [1, 1]} : vector<8x512xf32> to vector<8x128xf32>
    %22 = arith.negf %21 : vector<8x128xf32>
    %23 = math.exp %22 : vector<8x128xf32>
    %cst_15 = arith.constant 1.000000e+00 : f32
    %24 = vector.broadcast %cst_15 : f32 to vector<8x128xf32>
    %25 = arith.addf %24, %23 : vector<8x128xf32>
    %26 = arith.divf %24, %25 : vector<8x128xf32>
    %27 = vector.extract_strided_slice %14 {offsets = [0, 256], sizes = [8, 128], strides = [1, 1]} : vector<8x512xf32> to vector<8x128xf32>
    %28 = math.tanh %27 : vector<8x128xf32>
    %29 = vector.extract_strided_slice %14 {offsets = [0, 384], sizes = [8, 128], strides = [1, 1]} : vector<8x512xf32> to vector<8x128xf32>
    %30 = arith.negf %29 : vector<8x128xf32>
    %31 = math.exp %30 : vector<8x128xf32>
    %cst_16 = arith.constant 1.000000e+00 : f32
    %32 = vector.broadcast %cst_16 : f32 to vector<8x128xf32>
    %33 = arith.addf %32, %31 : vector<8x128xf32>
    %34 = arith.divf %32, %33 : vector<8x128xf32>
    %35 = arith.mulf %26, %6 : vector<8x128xf32>
    %36 = arith.mulf %20, %28 : vector<8x128xf32>
    %37 = arith.addf %35, %36 : vector<8x128xf32>
    %38 = math.tanh %37 : vector<8x128xf32>
    %39 = arith.mulf %34, %38 : vector<8x128xf32>
    %c0_17 = arith.constant 0 : index
    %c0_18 = arith.constant 0 : index
    %40 = vector.load %arg10[%c0_17, %c0_18] : memref<8x128xf32, #tpu.memory_space<vmem>>, vector<8x128xf32>
    tpu.vector_store %arg10[%c0_17, %c0_18], %39 {strides = array<i32>} : memref<8x128xf32, #tpu.memory_space<vmem>>, vector<8x128xf32>,
    %c0_19 = arith.constant 0 : index
    %c0_20 = arith.constant 0 : index
    %41 = vector.load %arg11[%c0_19, %c0_20] : memref<8x128xf32, #tpu.memory_space<vmem>>, vector<8x128xf32>
    tpu.vector_store %arg11[%c0_19, %c0_20], %37 {strides = array<i32>} : memref<8x128xf32, #tpu.memory_space<vmem>>, vector<8x128xf32>,
    %c0_21 = arith.constant 0 : index
    %c0_22 = arith.constant 0 : index
    %42 = vector.load %arg7[%c0_21, %c0_22] : memref<1x128xf32, #tpu.memory_space<vmem>>, vector<1x128xf32>
    %43 = vector.broadcast %42 : vector<1x128xf32> to vector<8x128xf32>
    %44 = arith.mulf %39, %43 : vector<8x128xf32>
    %cst_23 = arith.constant dense<0.000000e+00> : vector<8xf32>
    %45 = vector.multi_reduction <add>, %44, %cst_23 [1] : vector<8x128xf32> to vector<8xf32>
    %46 = vector.shape_cast %45 : vector<8xf32> to vector<8x1xf32>
    %c0_24 = arith.constant 0 : index
    %c0_25 = arith.constant 0 : index
    %47 = memref.load %arg8[%c0_24, %c0_25] : memref<1x1xf32, #tpu.memory_space<smem>>
    %48 = vector.broadcast %47 : f32 to vector<8x1xf32>
    %49 = arith.addf %46, %48 : vector<8x1xf32>
    %50 = arith.negf %49 : vector<8x1xf32>
    %51 = math.exp %50 : vector<8x1xf32>
    %cst_26 = arith.constant 1.000000e+00 : f32
    %52 = vector.broadcast %cst_26 : f32 to vector<8x1xf32>
    %53 = arith.addf %52, %51 : vector<8x1xf32>
    %54 = arith.divf %52, %53 : vector<8x1xf32>
    %55 = vector.shape_cast %54 : vector<8x1xf32> to vector<8x1xf32>
    %56 = vector.broadcast %55 : vector<8x1xf32> to vector<8x128xf32>
    %c0_27 = arith.constant 0 : index
    %c0_28 = arith.constant 0 : index
    %c0_29 = arith.constant 0 : index
    %57 = vector.load %arg9[%c0_27, %c0_28, %c0_29] : memref<1x8x128xf32, #tpu.memory_space<vmem>>, vector<1x8x128xf32>
    %58 = vector.shape_cast %57 : vector<1x8x128xf32> to vector<8x128xf32>
    %59 = vector.shape_cast %56 : vector<8x128xf32> to vector<1x8x128xf32>
    tpu.vector_store %arg9[%c0_27, %c0_28, %c0_29], %59 {strides = array<i32>} : memref<1x8x128xf32, #tpu.memory_space<vmem>>, vector<1x8x128xf32>,
    return
  }
  func.func @transform_0(%arg0: i32) -> (i32, i32, i32) {
    %c0_i32 = arith.constant 0 : i32
    %c0_i32_0 = arith.constant 0 : i32
    %c0_i32_1 = arith.constant 0 : i32
    return %arg0, %c0_i32, %c0_i32_0 : i32, i32, i32
  }
  func.func @transform_1(%arg0: i32) -> (i32, i32) {
    %c0_i32 = arith.constant 0 : i32
    %c0_i32_0 = arith.constant 0 : i32
    %c0_i32_1 = arith.constant 0 : i32
    return %c0_i32, %c0_i32_0 : i32, i32
  }
  func.func @transform_2(%arg0: i32) -> (i32, i32) {
    %c0_i32 = arith.constant 0 : i32
    %c0_i32_0 = arith.constant 0 : i32
    %c0_i32_1 = arith.constant 0 : i32
    return %c0_i32, %c0_i32_0 : i32, i32
  }
  func.func @transform_3(%arg0: i32) -> (i32, i32) {
    %c0_i32 = arith.constant 0 : i32
    %c0_i32_0 = arith.constant 0 : i32
    %c0_i32_1 = arith.constant 0 : i32
    return %c0_i32, %c0_i32_0 : i32, i32
  }
  func.func @transform_4(%arg0: i32) -> (i32, i32) {
    %c0_i32 = arith.constant 0 : i32
    %c0_i32_0 = arith.constant 0 : i32
    %c0_i32_1 = arith.constant 0 : i32
    return %c0_i32, %c0_i32_0 : i32, i32
  }
  func.func @transform_5(%arg0: i32) -> (i32, i32) {
    %c0_i32 = arith.constant 0 : i32
    %c0_i32_0 = arith.constant 0 : i32
    %c0_i32_1 = arith.constant 0 : i32
    return %c0_i32, %c0_i32_0 : i32, i32
  }
  func.func @transform_6(%arg0: i32) -> (i32, i32) {
    %c0_i32 = arith.constant 0 : i32
    %c0_i32_0 = arith.constant 0 : i32
    %c0_i32_1 = arith.constant 0 : i32
    return %c0_i32, %c0_i32_0 : i32, i32
  }
  func.func @transform_7(%arg0: i32) -> (i32, i32) {
    %c0_i32 = arith.constant 0 : i32
    %c0_i32_0 = arith.constant 0 : i32
    %c0_i32_1 = arith.constant 0 : i32
    return %c0_i32, %c0_i32_0 : i32, i32
  }
  func.func @transform_8(%arg0: i32) -> (i32, i32, i32) {
    %c0_i32 = arith.constant 0 : i32
    %c0_i32_0 = arith.constant 0 : i32
    %c0_i32_1 = arith.constant 0 : i32
    return %arg0, %c0_i32, %c0_i32_0 : i32, i32, i32
  }
  func.func @transform_9(%arg0: i32) -> (i32, i32) {
    %c0_i32 = arith.constant 0 : i32
    %c0_i32_0 = arith.constant 0 : i32
    %c0_i32_1 = arith.constant 0 : i32
    return %c0_i32, %c0_i32_0 : i32, i32
  }
  func.func @transform_10(%arg0: i32) -> (i32, i32) {
    %c0_i32 = arith.constant 0 : i32
    %c0_i32_0 = arith.constant 0 : i32
    %c0_i32_1 = arith.constant 0 : i32
    return %c0_i32, %c0_i32_0 : i32, i32
  }
}

</mosaic_0001>

<llo_original>
// kernel: tpu_custom_call.1
$region0: #{tpu_custom_call.1}
  #allocation0 [shape = 'u32[]', space=smem, size = 0x4, offset = 0x4, fixed_abs, tag = 'smem constant byte address 0x4 - core index']
  #allocation1 [shape = 'u32[144,128]{1,0:T(1,128)}', space=vmem, size = 0x12000, scoped, tag = 'internal scratch']
  #allocation2 [shape = 'f32[1,1]{1,0:T(1,128)S(6)}', space=smem, size = 0x200, scoped, tag = 'scoped memory for tpu_custom_call.1']
  %s0 = inlined_call_operand.hbm [shape: f32[6,8,32], index: 0, kind: input, shape index: {}]
  %s1 = inlined_call_operand.hbm [shape: f32[8,128], index: 1, kind: input, shape index: {}]
  %s2 = inlined_call_operand.hbm [shape: f32[8,128], index: 2, kind: input, shape index: {}]
  %s3 = inlined_call_operand.hbm [shape: f32[32,512], index: 3, kind: input, shape index: {}]
  %s4 = inlined_call_operand.hbm [shape: f32[128,512], index: 4, kind: input, shape index: {}]
  %s5 = inlined_call_operand.vmem [shape: f32[1,512], index: 5, kind: input, shape index: {}]
  %s6 = inlined_call_operand.vmem [shape: f32[1,128], index: 6, kind: input, shape index: {}]
  %s7 = inlined_call_operand.<no memory space> [shape: f32[1,1], index: 7, kind: input, shape index: {}]
  %s8 = inlined_call_operand.hbm [shape: f32[6,8,128], index: 8, kind: output, shape index: {0}]
  %s9 = inlined_call_operand.hbm [shape: f32[8,128], index: 9, kind: output, shape index: {1}]
  %s10 = inlined_call_operand.hbm [shape: f32[8,128], index: 10, kind: output, shape index: {2}]
  %11 = xla_tuple %s8, %s9, %s10
  %s12 = sld [smem:[#allocation0]]
  $region105: #{tpu_custom_call.1} parent=0
    _
  %s14 = ssub.s32 1, %s12
  %s15 = scalar_select 0, %s14, %s12
  %16 = sst [smem:[#allocation2]] %s7
  $region1: #{tpu_custom_call.1} parent=0
    #allocation3 [shape = 'u8[8192]{0}', space=vmem, size = 0x2000, scoped, tag = 'input window, operand 0']
    #allocation4 [shape = 's32[2]{0}', space=sflag, size = 0x8, scoped, tag = 'scoped memory for tpu_custom_call.1']
    #allocation5 [shape = 's32[2]{0}', space=sflag, size = 0x8, scoped, tag = 'scoped memory for tpu_custom_call.1']
    #allocation6 [shape = 'u8[4096]{0}', space=vmem, size = 0x1000, scoped, tag = 'input window, operand 1, single buffered']
    #allocation7 [shape = 's32[1]{0}', space=sflag, size = 0x4, scoped, tag = 'scoped memory for tpu_custom_call.1']
    #allocation8 [shape = 'u8[4096]{0}', space=vmem, size = 0x1000, scoped, tag = 'input window, operand 2, single buffered']
    #allocation9 [shape = 'u8[65536]{0}', space=vmem, size = 0x10000, scoped, tag = 'input window, operand 3, single buffered']
    #allocation10 [shape = 's32[1]{0}', space=sflag, size = 0x4, scoped, tag = 'scoped memory for tpu_custom_call.1']
    #allocation11 [shape = 'u8[262144]{0}', space=vmem, size = 0x40000, scoped, tag = 'input window, operand 4, single buffered']
    #allocation12 [shape = 'u8[8192]{0}', space=vmem, size = 0x2000, scoped, tag = 'output window, operand 0']
    #allocation13 [shape = 'u8[4096]{0}', space=vmem, size = 0x1000, scoped, tag = 'output window, operand 1, single buffered']
    #allocation14 [shape = 's32[1]{0}', space=sflag, size = 0x4, scoped, tag = 'scoped memory for tpu_custom_call.1']
    #allocation15 [shape = 'u8[4096]{0}', space=vmem, size = 0x1000, scoped, tag = 'output window, operand 2, single buffered']
    %17 = vsyncpa [#allocation4], 0
    %s18 = scalar_lea.sflag [#allocation4], 1
    %19 = vsyncpa %s18, 0
    %20 = vsyncpa [#allocation7], 0
    %21 = vsyncpa [#allocation10], 0
    %22 = vsyncpa [#allocation5], 0
    %s23 = scalar_lea.sflag [#allocation5], 1
    %24 = vsyncpa %s23, 0
    %25 = vsyncpa [#allocation14], 0
    loop: start=0, step=1, limit=8
    $region2: #{tpu_custom_call.1} parent=1 // loop_pre_header
      _
    $region3: #{tpu_custom_call.1} parent=1 // loop_header
      %s27 = sphi 0, %s31
      %p28 = scmp.ge.s32.totalorder %s27, 8
      %s37 = sphi 0, %s39
      %s40 = sphi 0, %s37
      %s41 = sphi 0, %s40
      %s57 = sphi 0, %s41
      %s61 = sphi 0, %s61
      %s63 = sphi 0, %s61
      %s64 = sphi 0, %s63
      %s78 = sphi 0, %s64
      %s82 = sphi 0, %s82
      %s84 = sphi 0, %s82
      %s85 = sphi 0, %s84
      %s99 = sphi 0, %s85
      %s103 = sphi 0, %s103
      %s105 = sphi 0, %s103
      %s106 = sphi 0, %s105
      %s120 = sphi 0, %s106
      %s124 = sphi 0, %s124
      %s126 = sphi 0, %s124
      %s127 = sphi 0, %s126
      %s141 = sphi 0, %s127
      %s145 = sphi 0, %s145
      %s147 = sphi 0, %s145
      %s148 = sphi 0, %s147
      %s162 = sphi 0, %s148
      %s166 = sphi 0, %s166
      %s168 = sphi 0, %s166
      %s169 = sphi 0, %s168
      %s183 = sphi 0, %s169
      %s187 = sphi 0, %s187
      %s189 = sphi 0, %s187
      %s190 = sphi 0, %s189
      %s204 = sphi 0, %s190
      %s210 = sphi 0, %s212
      %s213 = sphi 0, %s210
      %s214 = sphi 0, %s213
      %s230 = sphi 0, %s214
      %s234 = sphi 0, %s234
      %s236 = sphi 0, %s234
      %s237 = sphi 0, %s236
      %s251 = sphi 0, %s237
      %s255 = sphi 0, %s255
      %s257 = sphi 0, %s255
      %s258 = sphi 0, %s257
      %s272 = sphi 0, %s258
    $region4: #{tpu_custom_call.1} parent=1 // loop_header_branch
      %30 = sbr.rel (%p28) target = $region8
    $region5: #{tpu_custom_call.1} parent=1 // loop_body
      %s32 = ssub.s32 %s27, 1
      %s33 = ssub.s32 %s27, 2
      %s34 = sadd.s32 %s27, 1
      %s35 = ssub.s32 %s27, %s34
      %p36 = scmp.eq.s32.totalorder %s35, 0
      %s38 = sadd.s32 %s37, 1
      %s39 = scalar_select %p36, %s37, %s38
      %p42 = pneg %p36
      %p43 = scmp.eq.s32.totalorder %s27, 5
      %p44 = por %p42, %p43
      %p45 = scmp.ne.s32.totalorder %s37, %s40
      %p46 = scmp.eq.s32.totalorder %s27, 0
      %p47 = por %p45, %p46
      %p48 = scmp.ne.s32.totalorder %s37, %s40
      %p49 = scmp.eq.s32.totalorder %s32, 5
      %p50 = por %p48, %p49
      %p51 = scmp.ne.s32.totalorder %s40, %s41
      %p52 = scmp.eq.s32.totalorder %s32, 0
      %p53 = por %p51, %p52
      %p54 = scmp.ne.s32.totalorder %s40, %s41
      %p55 = scmp.eq.s32.totalorder %s33, 5
      %p56 = por %p54, %p55
      %p58 = scmp.ne.s32.totalorder %s41, %s57
      %p59 = scmp.eq.s32.totalorder %s33, 0
      %p60 = por %p58, %p59
      %s62 = sadd.s32 %s61, 1
      %p65 = scmp.eq.s32.totalorder %s27, 5
      %p66 = scmp.ne.s32.totalorder %s61, %s63
      %p67 = scmp.eq.s32.totalorder %s27, 0
      %p68 = por %p66, %p67
      %p69 = scmp.ne.s32.totalorder %s61, %s63
      %p70 = scmp.eq.s32.totalorder %s32, 5
      %p71 = por %p69, %p70
      %p72 = scmp.ne.s32.totalorder %s63, %s64
      %p73 = scmp.eq.s32.totalorder %s32, 0
      %p74 = por %p72, %p73
      %p75 = scmp.ne.s32.totalorder %s63, %s64
      %p76 = scmp.eq.s32.totalorder %s33, 5
      %p77 = por %p75, %p76
      %p79 = scmp.ne.s32.totalorder %s64, %s78
      %p80 = scmp.eq.s32.totalorder %s33, 0
      %p81 = por %p79, %p80
      %s83 = sadd.s32 %s82, 1
      %p86 = scmp.eq.s32.totalorder %s27, 5
      %p87 = scmp.ne.s32.totalorder %s82, %s84
      %p88 = scmp.eq.s32.totalorder %s27, 0
      %p89 = por %p87, %p88
      %p90 = scmp.ne.s32.totalorder %s82, %s84
      %p91 = scmp.eq.s32.totalorder %s32, 5
      %p92 = por %p90, %p91
      %p93 = scmp.ne.s32.totalorder %s84, %s85
      %p94 = scmp.eq.s32.totalorder %s32, 0
      %p95 = por %p93, %p94
      %p96 = scmp.ne.s32.totalorder %s84, %s85
      %p97 = scmp.eq.s32.totalorder %s33, 5
      %p98 = por %p96, %p97
      %p100 = scmp.ne.s32.totalorder %s85, %s99
      %p101 = scmp.eq.s32.totalorder %s33, 0
      %p102 = por %p100, %p101
      %s104 = sadd.s32 %s103, 1
      %p107 = scmp.eq.s32.totalorder %s27, 5
      %p108 = scmp.ne.s32.totalorder %s103, %s105
      %p109 = scmp.eq.s32.totalorder %s27, 0
      %p110 = por %p108, %p109
      %p111 = scmp.ne.s32.totalorder %s103, %s105
      %p112 = scmp.eq.s32.totalorder %s32, 5
      %p113 = por %p111, %p112
      %p114 = scmp.ne.s32.totalorder %s105, %s106
      %p115 = scmp.eq.s32.totalorder %s32, 0
      %p116 = por %p114, %p115
      %p117 = scmp.ne.s32.totalorder %s105, %s106
      %p118 = scmp.eq.s32.totalorder %s33, 5
      %p119 = por %p117, %p118
      %p121 = scmp.ne.s32.totalorder %s106, %s120
      %p122 = scmp.eq.s32.totalorder %s33, 0
      %p123 = por %p121, %p122
      %s125 = sadd.s32 %s124, 1
      %p128 = scmp.eq.s32.totalorder %s27, 5
      %p129 = scmp.ne.s32.totalorder %s124, %s126
      %p130 = scmp.eq.s32.totalorder %s27, 0
      %p131 = por %p129, %p130
      %p132 = scmp.ne.s32.totalorder %s124, %s126
      %p133 = scmp.eq.s32.totalorder %s32, 5
      %p134 = por %p132, %p133
      %p135 = scmp.ne.s32.totalorder %s126, %s127
      %p136 = scmp.eq.s32.totalorder %s32, 0
      %p137 = por %p135, %p136
      %p138 = scmp.ne.s32.totalorder %s126, %s127
      %p139 = scmp.eq.s32.totalorder %s33, 5
      %p140 = por %p138, %p139
      %p142 = scmp.ne.s32.totalorder %s127, %s141
      %p143 = scmp.eq.s32.totalorder %s33, 0
      %p144 = por %p142, %p143
      %s146 = sadd.s32 %s145, 1
      %p149 = scmp.eq.s32.totalorder %s27, 5
      %p150 = scmp.ne.s32.totalorder %s145, %s147
      %p151 = scmp.eq.s32.totalorder %s27, 0
      %p152 = por %p150, %p151
      %p153 = scmp.ne.s32.totalorder %s145, %s147
      %p154 = scmp.eq.s32.totalorder %s32, 5
      %p155 = por %p153, %p154
      %p156 = scmp.ne.s32.totalorder %s147, %s148
      %p157 = scmp.eq.s32.totalorder %s32, 0
      %p158 = por %p156, %p157
      %p159 = scmp.ne.s32.totalorder %s147, %s148
      %p160 = scmp.eq.s32.totalorder %s33, 5
      %p161 = por %p159, %p160
      %p163 = scmp.ne.s32.totalorder %s148, %s162
      %p164 = scmp.eq.s32.totalorder %s33, 0
      %p165 = por %p163, %p164
      %s167 = sadd.s32 %s166, 1
      %p170 = scmp.eq.s32.totalorder %s27, 5
      %p171 = scmp.ne.s32.totalorder %s166, %s168
      %p172 = scmp.eq.s32.totalorder %s27, 0
      %p173 = por %p171, %p172
      %p174 = scmp.ne.s32.totalorder %s166, %s168
      %p175 = scmp.eq.s32.totalorder %s32, 5
      %p176 = por %p174, %p175
      %p177 = scmp.ne.s32.totalorder %s168, %s169
      %p178 = scmp.eq.s32.totalorder %s32, 0
      %p179 = por %p177, %p178
      %p180 = scmp.ne.s32.totalorder %s168, %s169
      %p181 = scmp.eq.s32.totalorder %s33, 5
      %p182 = por %p180, %p181
      %p184 = scmp.ne.s32.totalorder %s169, %s183
      %p185 = scmp.eq.s32.totalorder %s33, 0
      %p186 = por %p184, %p185
      %s188 = sadd.s32 %s187, 1
      %p191 = scmp.eq.s32.totalorder %s27, 5
      %p192 = scmp.ne.s32.totalorder %s187, %s189
      %p193 = scmp.eq.s32.totalorder %s27, 0
      %p194 = por %p192, %p193
      %p195 = scmp.ne.s32.totalorder %s187, %s189
      %p196 = scmp.eq.s32.totalorder %s32, 5
      %p197 = por %p195, %p196
      %p198 = scmp.ne.s32.totalorder %s189, %s190
      %p199 = scmp.eq.s32.totalorder %s32, 0
      %p200 = por %p198, %p199
      %p201 = scmp.ne.s32.totalorder %s189, %s190
      %p202 = scmp.eq.s32.totalorder %s33, 5
      %p203 = por %p201, %p202
      %p205 = scmp.ne.s32.totalorder %s190, %s204
      %p206 = scmp.eq.s32.totalorder %s33, 0
      %p207 = por %p205, %p206
      %s208 = ssub.s32 %s27, %s34
      %p209 = scmp.eq.s32.totalorder %s208, 0
      %s211 = sadd.s32 %s210, 1
      %s212 = scalar_select %p209, %s210, %s211
      %p215 = pneg %p209
      %p216 = scmp.eq.s32.totalorder %s27, 5
      %p217 = por %p215, %p216
      %p218 = scmp.ne.s32.totalorder %s210, %s213
      %p219 = scmp.eq.s32.totalorder %s27, 0
      %p220 = por %p218, %p219
      %p221 = scmp.ne.s32.totalorder %s210, %s213
      %p222 = scmp.eq.s32.totalorder %s32, 5
      %p223 = por %p221, %p222
      %p224 = scmp.ne.s32.totalorder %s213, %s214
      %p225 = scmp.eq.s32.totalorder %s32, 0
      %p226 = por %p224, %p225
      %p227 = scmp.ne.s32.totalorder %s213, %s214
      %p228 = scmp.eq.s32.totalorder %s33, 5
      %p229 = por %p227, %p228
      %p231 = scmp.ne.s32.totalorder %s214, %s230
      %p232 = scmp.eq.s32.totalorder %s33, 0
      %p233 = por %p231, %p232
      %s235 = sadd.s32 %s234, 1
      %p238 = scmp.eq.s32.totalorder %s27, 5
      %p239 = scmp.ne.s32.totalorder %s234, %s236
      %p240 = scmp.eq.s32.totalorder %s27, 0
      %p241 = por %p239, %p240
      %p242 = scmp.ne.s32.totalorder %s234, %s236
      %p243 = scmp.eq.s32.totalorder %s32, 5
      %p244 = por %p242, %p243
      %p245 = scmp.ne.s32.totalorder %s236, %s237
      %p246 = scmp.eq.s32.totalorder %s32, 0
      %p247 = por %p245, %p246
      %p248 = scmp.ne.s32.totalorder %s236, %s237
      %p249 = scmp.eq.s32.totalorder %s33, 5
      %p250 = por %p248, %p249
      %p252 = scmp.ne.s32.totalorder %s237, %s251
      %p253 = scmp.eq.s32.totalorder %s33, 0
      %p254 = por %p252, %p253
      %s256 = sadd.s32 %s255, 1
      %p259 = scmp.eq.s32.totalorder %s27, 5
      %p260 = scmp.ne.s32.totalorder %s255, %s257
      %p261 = scmp.eq.s32.totalorder %s27, 0
      %p262 = por %p260, %p261
      %p263 = scmp.ne.s32.totalorder %s255, %s257
      %p264 = scmp.eq.s32.totalorder %s32, 5
      %p265 = por %p263, %p264
      %p266 = scmp.ne.s32.totalorder %s257, %s258
      %p267 = scmp.eq.s32.totalorder %s32, 0
      %p268 = por %p266, %p267
      %p269 = scmp.ne.s32.totalorder %s257, %s258
      %p270 = scmp.eq.s32.totalorder %s33, 5
      %p271 = por %p269, %p270
      %p273 = scmp.ne.s32.totalorder %s258, %s272
      %p274 = scmp.eq.s32.totalorder %s33, 0
      %p275 = por %p273, %p274
      %p276 = scmp.le.s32.totalorder 1, %s27
      %p277 = scmp.lt.s32.totalorder %s27, 7
      %p278 = pnand %p276, %p277
      %p279 = pneg %p278
      // Predicated region
      $region9: #{tpu_custom_call.1} parent=5 // pred_check
        _
      $region10: #{tpu_custom_call.1} parent=5 // pred_check_branch
        %281 = sbr.rel (%p278) target = $region12
      $region11: #{tpu_custom_call.1} parent=5 // pred_region
        %s282 = ssub.s32 %s27, 1
        // Predicated region
        $region13: #{tpu_custom_call.1} parent=11 // pred_check
          %p283 = pneg %p74
        $region14: #{tpu_custom_call.1} parent=11 // pred_check_branch
          %285 = sbr.rel (%p283) target = $region16
        $region15: #{tpu_custom_call.1} parent=11 // pred_region
          %s287 = ssub.s32 128, 128
          %288 = vsyncadd [#allocation7], %s287
          %s290 = sshll.u32 [#allocation6], 4
          %s291 = int_to_ptr.vmem [resolvable:$true] %s290
          %293 = dma.hbm_to_vmem [thread:$0]  %s1, 128, %s291, [#allocation7]
        $region16: #{tpu_custom_call.1} parent=11 // pred_fallthru
          _
        // Predicated region
        $region17: #{tpu_custom_call.1} parent=11 // pred_check
          %p294 = pneg %p95
        $region18: #{tpu_custom_call.1} parent=11 // pred_check_branch
          %296 = sbr.rel (%p294) target = $region20
        $region19: #{tpu_custom_call.1} parent=11 // pred_region
          %s298 = ssub.s32 128, 128
          %299 = vsyncadd [#allocation7], %s298
          %s301 = sshll.u32 [#allocation8], 4
          %s302 = int_to_ptr.vmem [resolvable:$true] %s301
          %304 = dma.hbm_to_vmem [thread:$0]  %s2, 128, %s302, [#allocation7]
        $region20: #{tpu_custom_call.1} parent=11 // pred_fallthru
          _
        // Predicated region
        $region21: #{tpu_custom_call.1} parent=11 // pred_check
          %p305 = pneg %p116
        $region22: #{tpu_custom_call.1} parent=11 // pred_check_branch
          %307 = sbr.rel (%p305) target = $region24
        $region23: #{tpu_custom_call.1} parent=11 // pred_region
          %s309 = ssub.s32 2048, 2048
          %310 = vsyncadd [#allocation10], %s309
          %s311 = sshll.u32 [#allocation9], 4
          %s312 = int_to_ptr.vmem [resolvable:$true] %s311
          %317 = dma.hbm_to_vmem [thread:$0]  %s3, 2048, %s312, [#allocation10], 512, 512, 32
        $region24: #{tpu_custom_call.1} parent=11 // pred_fallthru
          _
        // Predicated region
        $region25: #{tpu_custom_call.1} parent=11 // pred_check
          %p318 = pneg %p137
        $region26: #{tpu_custom_call.1} parent=11 // pred_check_branch
          %320 = sbr.rel (%p318) target = $region28
        $region27: #{tpu_custom_call.1} parent=11 // pred_region
          %s322 = ssub.s32 8192, 8192
          %323 = vsyncadd [#allocation10], %s322
          %s324 = sshll.u32 [#allocation11], 4
          %s325 = int_to_ptr.vmem [resolvable:$true] %s324
          %330 = dma.hbm_to_vmem [thread:$0]  %s4, 8192, %s325, [#allocation10], 512, 512, 32
        $region28: #{tpu_custom_call.1} parent=11 // pred_fallthru
          _
        // Predicated region
        $region29: #{tpu_custom_call.1} parent=11 // pred_check
          %p331 = pneg %p158
        $region30: #{tpu_custom_call.1} parent=11 // pred_check_branch
          %333 = sbr.rel (%p331) target = $region32
        $region31: #{tpu_custom_call.1} parent=11 // pred_region
          _
        $region32: #{tpu_custom_call.1} parent=11 // pred_fallthru
          _
        // Predicated region
        $region33: #{tpu_custom_call.1} parent=11 // pred_check
          %p334 = pneg %p179
        $region34: #{tpu_custom_call.1} parent=11 // pred_check_branch
          %336 = sbr.rel (%p334) target = $region36
        $region35: #{tpu_custom_call.1} parent=11 // pred_region
          _
        $region36: #{tpu_custom_call.1} parent=11 // pred_fallthru
          _
        // Predicated region
        $region37: #{tpu_custom_call.1} parent=11 // pred_check
          %p337 = pneg %p200
        $region38: #{tpu_custom_call.1} parent=11 // pred_check_branch
          %339 = sbr.rel (%p337) target = $region40
        $region39: #{tpu_custom_call.1} parent=11 // pred_region
          _
        $region40: #{tpu_custom_call.1} parent=11 // pred_fallthru
          _
      $region12: #{tpu_custom_call.1} parent=5 // pred_fallthru
        _
      %p340 = scmp.lt.s32.totalorder %s27, 6
      // Predicated region
      $region41: #{tpu_custom_call.1} parent=5 // pred_check
        %p341 = pneg %p340
      $region42: #{tpu_custom_call.1} parent=5 // pred_check_branch
        %343 = sbr.rel (%p341) target = $region44
      $region43: #{tpu_custom_call.1} parent=5 // pred_region
        // Predicated region
        $region45: #{tpu_custom_call.1} parent=43 // pred_check
          %p344 = pneg %p47
        $region46: #{tpu_custom_call.1} parent=43 // pred_check_branch
          %346 = sbr.rel (%p344) target = $region48
        $region47: #{tpu_custom_call.1} parent=43 // pred_region
          %s347 = sand.u32 %s37, 1
          %s348 = scalar_lea.sflag [#allocation4], %s347
          %s349 = sand.u32 %s37, 1
          %s350 = smul.addr %s349, 8
          %s351 = scalar_lea.vmem [#allocation3], %s350
          %s353 = ssub.s32 128, 128
          %354 = vsyncadd %s348, %s353
          %s355 = smul.addr %s27, 128
          %s356 = scalar_lea.hbm %s0, %s355
          %s358 = sshll.u32 %s351, 4
          %s359 = int_to_ptr.vmem [resolvable:$true] %s358
          %361 = dma.hbm_to_vmem [thread:$0]  %s356, 128, %s359, %s348
        $region48: #{tpu_custom_call.1} parent=43 // pred_fallthru
          _
      $region44: #{tpu_custom_call.1} parent=5 // pred_fallthru
        _
      %p362 = scmp.le.s32.totalorder 1, %s27
      %p363 = scmp.lt.s32.totalorder %s27, 7
      %p364 = pnand %p362, %p363
      %p365 = pneg %p364
      // Predicated region
      $region49: #{tpu_custom_call.1} parent=5 // pred_check
        _
      $region50: #{tpu_custom_call.1} parent=5 // pred_check_branch
        %367 = sbr.rel (%p364) target = $region52
      $region51: #{tpu_custom_call.1} parent=5 // pred_region
        %s368 = ssub.s32 %s27, 1
        %s369 = sand.u32 %s40, 1
        %s370 = scalar_lea.sflag [#allocation4], %s369
        %s371 = sand.u32 %s40, 1
        %s372 = smul.addr %s371, 8
        %s373 = scalar_lea.vmem [#allocation3], %s372
        // Predicated region
        $region53: #{tpu_custom_call.1} parent=51 // pred_check
          %p374 = pneg %p53
        $region54: #{tpu_custom_call.1} parent=51 // pred_check_branch
          %376 = sbr.rel (%p374) target = $region56
        $region55: #{tpu_custom_call.1} parent=51 // pred_region
          %377 = dma.done %s370, 128
        $region56: #{tpu_custom_call.1} parent=51 // pred_fallthru
          _
        // Predicated region
        $region57: #{tpu_custom_call.1} parent=51 // pred_check
          %p378 = pneg %p74
        $region58: #{tpu_custom_call.1} parent=51 // pred_check_branch
          %380 = sbr.rel (%p378) target = $region60
        $region59: #{tpu_custom_call.1} parent=51 // pred_region
          %381 = dma.done [#allocation7], 128
        $region60: #{tpu_custom_call.1} parent=51 // pred_fallthru
          _
        // Predicated region
        $region61: #{tpu_custom_call.1} parent=51 // pred_check
          %p382 = pneg %p95
        $region62: #{tpu_custom_call.1} parent=51 // pred_check_branch
          %384 = sbr.rel (%p382) target = $region64
        $region63: #{tpu_custom_call.1} parent=51 // pred_region
          %385 = dma.done [#allocation7], 128
        $region64: #{tpu_custom_call.1} parent=51 // pred_fallthru
          _
        // Predicated region
        $region65: #{tpu_custom_call.1} parent=51 // pred_check
          %p386 = pneg %p116
        $region66: #{tpu_custom_call.1} parent=51 // pred_check_branch
          %388 = sbr.rel (%p386) target = $region68
        $region67: #{tpu_custom_call.1} parent=51 // pred_region
          %389 = dma.done [#allocation10], 2048
        $region68: #{tpu_custom_call.1} parent=51 // pred_fallthru
          _
        // Predicated region
        $region69: #{tpu_custom_call.1} parent=51 // pred_check
          %p390 = pneg %p137
        $region70: #{tpu_custom_call.1} parent=51 // pred_check_branch
          %392 = sbr.rel (%p390) target = $region72
        $region71: #{tpu_custom_call.1} parent=51 // pred_region
          %393 = dma.done [#allocation10], 8192
        $region72: #{tpu_custom_call.1} parent=51 // pred_fallthru
          _
        %s394 = sand.u32 %s40, 1
        %s395 = scalar_lea.sflag [#allocation4], %s394
        %s396 = sand.u32 %s40, 1
        %s397 = smul.addr %s396, 8
        %s398 = scalar_lea.vmem [#allocation3], %s397
        %p399 = pneg %p53
        %p400 = pneg %p50
        %p401 = pneg %p74
        %p402 = pneg %p71
        %p403 = pneg %p95
        %p404 = pneg %p92
        %p405 = pneg %p116
        %p406 = pneg %p113
        %p407 = pneg %p137
        %p408 = pneg %p134
        %p409 = pneg %p158
        %p410 = pneg %p155
        %p411 = pneg %p179
        %p412 = pneg %p176
        %p413 = pneg %p200
        %p414 = pneg %p197
        %p415 = pneg %p226
        %p416 = pneg %p223
        %s417 = sand.u32 %s213, 1
        %s418 = scalar_lea.sflag [#allocation5], %s417
        %s419 = sand.u32 %s213, 1
        %s420 = smul.addr %s419, 8
        %s421 = scalar_lea.vmem [#allocation12], %s420
        %p422 = pneg %p247
        %p423 = pneg %p244
        %p424 = pneg %p268
        %p425 = pneg %p265
        %p426 = scmp.eq.s32.totalorder %s32, 0
        // Predicated region
        $region73: #{tpu_custom_call.1} parent=51 // pred_check
          %p427 = pneg %p426
        $region74: #{tpu_custom_call.1} parent=51 // pred_check_branch
          %429 = sbr.rel (%p427) target = $region76
        $region75: #{tpu_custom_call.1} parent=51 // pred_region
          %v430 = vld [vmem:[#allocation6] sm:$0xff]
          %431 = vst [vmem:[#allocation13] sm:$0xff] %v430
          %v432 = vld [vmem:[#allocation8] sm:$0xff]
          %433 = vst [vmem:[#allocation15] sm:$0xff] %v432
        $region76: #{tpu_custom_call.1} parent=51 // pred_fallthru
          _
        %v434 = vld [vmem:[%s373] sm:$0xff]
        %v435 = vld [vmem:[#allocation13] sm:$0xff]
        %v436 = vld [vmem:[#allocation15] sm:$0xff]
        %v437 = vld [vmem:[#allocation9] sm:$0xff]
        %v438 = vld [vmem:[#allocation9 + $0x8] sm:$0xff]
        %v439 = vld [vmem:[#allocation9 + $0x10] sm:$0xff]
        %v440 = vld [vmem:[#allocation9 + $0x18] sm:$0xff]
        %v441 = vld [vmem:[#allocation9 + $0x20] sm:$0xff]
        %v442 = vld [vmem:[#allocation9 + $0x28] sm:$0xff]
        %v443 = vld [vmem:[#allocation9 + $0x30] sm:$0xff]
        %v444 = vld [vmem:[#allocation9 + $0x38] sm:$0xff]
        %v445 = vld [vmem:[#allocation9 + $0x40] sm:$0xff]
        %v446 = vld [vmem:[#allocation9 + $0x48] sm:$0xff]
        %v447 = vld [vmem:[#allocation9 + $0x50] sm:$0xff]
        %v448 = vld [vmem:[#allocation9 + $0x58] sm:$0xff]
        %v449 = vld [vmem:[#allocation9 + $0x60] sm:$0xff]
        %v450 = vld [vmem:[#allocation9 + $0x68] sm:$0xff]
        %v451 = vld [vmem:[#allocation9 + $0x70] sm:$0xff]
        %v452 = vld [vmem:[#allocation9 + $0x78] sm:$0xff]
        %v453 = vld [vmem:[#allocation11] sm:$0xff]
        %v454 = vld [vmem:[#allocation11 + $0x8] sm:$0xff]
        %v455 = vld [vmem:[#allocation11 + $0x10] sm:$0xff]
        %v456 = vld [vmem:[#allocation11 + $0x18] sm:$0xff]
        %v457 = vld [vmem:[#allocation11 + $0x20] sm:$0xff]
        %v458 = vld [vmem:[#allocation11 + $0x28] sm:$0xff]
        %v459 = vld [vmem:[#allocation11 + $0x30] sm:$0xff]
        %v460 = vld [vmem:[#allocation11 + $0x38] sm:$0xff]
        %v461 = vld [vmem:[#allocation11 + $0x40] sm:$0xff]
        %v462 = vld [vmem:[#allocation11 + $0x48] sm:$0xff]
        %v463 = vld [vmem:[#allocation11 + $0x50] sm:$0xff]
        %v464 = vld [vmem:[#allocation11 + $0x58] sm:$0xff]
        %v465 = vld [vmem:[#allocation11 + $0x60] sm:$0xff]
        %v466 = vld [vmem:[#allocation11 + $0x68] sm:$0xff]
        %v467 = vld [vmem:[#allocation11 + $0x70] sm:$0xff]
        %v468 = vld [vmem:[#allocation11 + $0x78] sm:$0xff]
        %v469 = vld [vmem:[#allocation11 + $0x80] sm:$0xff]
        %v470 = vld [vmem:[#allocation11 + $0x88] sm:$0xff]
        %v471 = vld [vmem:[#allocation11 + $0x90] sm:$0xff]
        %v472 = vld [vmem:[#allocation11 + $0x98] sm:$0xff]
        %v473 = vld [vmem:[#allocation11 + $0xa0] sm:$0xff]
        %v474 = vld [vmem:[#allocation11 + $0xa8] sm:$0xff]
        %v475 = vld [vmem:[#allocation11 + $0xb0] sm:$0xff]
        %v476 = vld [vmem:[#allocation11 + $0xb8] sm:$0xff]
        %v477 = vld [vmem:[#allocation11 + $0xc0] sm:$0xff]
        %v478 = vld [vmem:[#allocation11 + $0xc8] sm:$0xff]
        %v479 = vld [vmem:[#allocation11 + $0xd0] sm:$0xff]
        %v480 = vld [vmem:[#allocation11 + $0xd8] sm:$0xff]
        %v481 = vld [vmem:[#allocation11 + $0xe0] sm:$0xff]
        %v482 = vld [vmem:[#allocation11 + $0xe8] sm:$0xff]
        %v483 = vld [vmem:[#allocation11 + $0xf0] sm:$0xff]
        %v484 = vld [vmem:[#allocation11 + $0xf8] sm:$0xff]
        %v485 = vld [vmem:[#allocation11 + $0x100] sm:$0xff]
        %v486 = vld [vmem:[#allocation11 + $0x108] sm:$0xff]
        %v487 = vld [vmem:[#allocation11 + $0x110] sm:$0xff]
        %v488 = vld [vmem:[#allocation11 + $0x118] sm:$0xff]
        %v489 = vld [vmem:[#allocation11 + $0x120] sm:$0xff]
        %v490 = vld [vmem:[#allocation11 + $0x128] sm:$0xff]
        %v491 = vld [vmem:[#allocation11 + $0x130] sm:$0xff]
        %v492 = vld [vmem:[#allocation11 + $0x138] sm:$0xff]
        %v493 = vld [vmem:[#allocation11 + $0x140] sm:$0xff]
        %v494 = vld [vmem:[#allocation11 + $0x148] sm:$0xff]
        %v495 = vld [vmem:[#allocation11 + $0x150] sm:$0xff]
        %v496 = vld [vmem:[#allocation11 + $0x158] sm:$0xff]
        %v497 = vld [vmem:[#allocation11 + $0x160] sm:$0xff]
        %v498 = vld [vmem:[#allocation11 + $0x168] sm:$0xff]
        %v499 = vld [vmem:[#allocation11 + $0x170] sm:$0xff]
        %v500 = vld [vmem:[#allocation11 + $0x178] sm:$0xff]
        %v501 = vld [vmem:[#allocation11 + $0x180] sm:$0xff]
        %v502 = vld [vmem:[#allocation11 + $0x188] sm:$0xff]
        %v503 = vld [vmem:[#allocation11 + $0x190] sm:$0xff]
        %v504 = vld [vmem:[#allocation11 + $0x198] sm:$0xff]
        %v505 = vld [vmem:[#allocation11 + $0x1a0] sm:$0xff]
        %v506 = vld [vmem:[#allocation11 + $0x1a8] sm:$0xff]
        %v507 = vld [vmem:[#allocation11 + $0x1b0] sm:$0xff]
        %v508 = vld [vmem:[#allocation11 + $0x1b8] sm:$0xff]
        %v509 = vld [vmem:[#allocation11 + $0x1c0] sm:$0xff]
        %v510 = vld [vmem:[#allocation11 + $0x1c8] sm:$0xff]
        %v511 = vld [vmem:[#allocation11 + $0x1d0] sm:$0xff]
        %v512 = vld [vmem:[#allocation11 + $0x1d8] sm:$0xff]
        %v513 = vld [vmem:[#allocation11 + $0x1e0] sm:$0xff]
        %v514 = vld [vmem:[#allocation11 + $0x1e8] sm:$0xff]
        %v515 = vld [vmem:[#allocation11 + $0x1f0] sm:$0xff]
        %v516 = vld [vmem:[#allocation11 + $0x1f8] sm:$0xff]
        %517 = vmatprep.subr.mxu0 %v514
        %518 = vmatpush1.msra.mxu0 %v513
        %519 = vmatprep.subr.mxu0 %v510
        %520 = vmatpush1.msra.mxu0 %v509
        %521 = vmatprep.subr.mxu0 %v506
        %522 = vmatpush1.msra.mxu0 %v505
        %523 = vmatprep.subr.mxu0 %v502
        %524 = vmatpush1.msra.mxu0 %v501
        %525 = vmatprep.subr.mxu0 %v498
        %526 = vmatpush1.msra.mxu0 %v497
        %527 = vmatprep.subr.mxu0 %v494
        %528 = vmatpush1.msra.mxu0 %v493
        %529 = vmatprep.subr.mxu0 %v490
        %530 = vmatpush1.msra.mxu0 %v489
        %531 = vmatprep.subr.mxu0 %v486
        %532 = vmatpush1.msra.mxu0 %v485
        %533 = vmatprep.subr.mxu0 %v482
        %534 = vmatpush1.msra.mxu0 %v481
        %535 = vmatprep.subr.mxu0 %v478
        %536 = vmatpush1.msra.mxu0 %v477
        %537 = vmatprep.subr.mxu0 %v474
        %538 = vmatpush1.msra.mxu0 %v473
        %539 = vmatprep.subr.mxu0 %v470
        %540 = vmatpush1.msra.mxu0 %v469
        %541 = vmatprep.subr.mxu0 %v466
        %542 = vmatpush1.msra.mxu0 %v465
        %543 = vmatprep.subr.mxu0 %v462
        %544 = vmatpush1.msra.mxu0 %v461
        %545 = vmatprep.subr.mxu0 %v458
        %546 = vmatpush1.msra.mxu0 %v457
        %547 = vmatprep.subr.mxu0 %v454
        %548 = vmatpush1.msra.mxu0 %v453
        %549 = vmatprep.subr.mxu0 0.0
        %550 = vmatpush2.msra.mxu0 0.0
        %551 = vmatprep.subr.mxu0 0.0
        %552 = vmatpush2.msra.mxu0 0.0
        %553 = vmatprep.subr.mxu0 0.0
        %554 = vmatpush2.msra.mxu0 0.0
        %555 = vmatprep.subr.mxu0 0.0
        %556 = vmatpush2.msra.mxu0 0.0
        %557 = vmatprep.subr.mxu0 0.0
        %558 = vmatpush2.msra.mxu0 0.0
        %559 = vmatprep.subr.mxu0 0.0
        %560 = vmatpush2.msra.mxu0 0.0
        %561 = vmatprep.subr.mxu0 0.0
        %562 = vmatpush2.msra.mxu0 0.0
        %563 = vmatprep.subr.mxu0 0.0
        %564 = vmatpush2.msra.mxu0 0.0
        %565 = vmatprep.subr.mxu0 0.0
        %566 = vmatpush2.msra.mxu0 0.0
        %567 = vmatprep.subr.mxu0 0.0
        %568 = vmatpush2.msra.mxu0 0.0
        %569 = vmatprep.subr.mxu0 0.0
        %570 = vmatpush2.msra.mxu0 0.0
        %571 = vmatprep.subr.mxu0 0.0
        %572 = vmatpush2.msra.mxu0 0.0
        %573 = vmatprep.subr.mxu0 0.0
        %574 = vmatpush2.msra.mxu0 0.0
        %575 = vmatprep.subr.mxu0 0.0
        %576 = vmatpush2.msra.mxu0 0.0
        %577 = vmatprep.subr.mxu0 0.0
        %578 = vmatpush2.msra.mxu0 0.0
        %579 = vmatprep.subr.mxu0 0.0
        %580 = vmatpush2.msra.mxu0 0.0
        %581 = vmatprep.mubr.f32.mxu0 0.0
        %582 = vmatmul.mubr.f32.gmra.mxu0 %v435
        %v583 = vpop.f32.mrf.mxu0
        %v584 = vadd.f32 0.0, %v583
        %v585 = vpop.f32.mrf.mxu0
        %v586 = vadd.f32 0.0, %v585
        %587 = vdwg.mxu0
        %588 = vmatprep.subr.mxu0 %v516
        %589 = vmatpush1.msra.mxu0 %v515
        %590 = vmatprep.subr.mxu0 %v512
        %591 = vmatpush1.msra.mxu0 %v511
        %592 = vmatprep.subr.mxu0 %v508
        %593 = vmatpush1.msra.mxu0 %v507
        %594 = vmatprep.subr.mxu0 %v504
        %595 = vmatpush1.msra.mxu0 %v503
        %596 = vmatprep.subr.mxu0 %v500
        %597 = vmatpush1.msra.mxu0 %v499
        %598 = vmatprep.subr.mxu0 %v496
        %599 = vmatpush1.msra.mxu0 %v495
        %600 = vmatprep.subr.mxu0 %v492
        %601 = vmatpush1.msra.mxu0 %v491
        %602 = vmatprep.subr.mxu0 %v488
        %603 = vmatpush1.msra.mxu0 %v487
        %604 = vmatprep.subr.mxu0 %v484
        %605 = vmatpush1.msra.mxu0 %v483
        %606 = vmatprep.subr.mxu0 %v480
        %607 = vmatpush1.msra.mxu0 %v479
        %608 = vmatprep.subr.mxu0 %v476
        %609 = vmatpush1.msra.mxu0 %v475
        %610 = vmatprep.subr.mxu0 %v472
        %611 = vmatpush1.msra.mxu0 %v471
        %612 = vmatprep.subr.mxu0 %v468
        %613 = vmatpush1.msra.mxu0 %v467
        %614 = vmatprep.subr.mxu0 %v464
        %615 = vmatpush1.msra.mxu0 %v463
        %616 = vmatprep.subr.mxu0 %v460
        %617 = vmatpush1.msra.mxu0 %v459
        %618 = vmatprep.subr.mxu0 %v456
        %619 = vmatpush1.msra.mxu0 %v455
        %620 = vmatprep.subr.mxu0 0.0
        %621 = vmatpush2.msra.mxu0 0.0
        %622 = vmatprep.subr.mxu0 0.0
        %623 = vmatpush2.msra.mxu0 0.0
        %624 = vmatprep.subr.mxu0 0.0
        %625 = vmatpush2.msra.mxu0 0.0
        %626 = vmatprep.subr.mxu0 0.0
        %627 = vmatpush2.msra.mxu0 0.0
        %628 = vmatprep.subr.mxu0 0.0
        %629 = vmatpush2.msra.mxu0 0.0
        %630 = vmatprep.subr.mxu0 0.0
        %631 = vmatpush2.msra.mxu0 0.0
        %632 = vmatprep.subr.mxu0 0.0
        %633 = vmatpush2.msra.mxu0 0.0
        %634 = vmatprep.subr.mxu0 0.0
        %635 = vmatpush2.msra.mxu0 0.0
        %636 = vmatprep.subr.mxu0 0.0
        %637 = vmatpush2.msra.mxu0 0.0
        %638 = vmatprep.subr.mxu0 0.0
        %639 = vmatpush2.msra.mxu0 0.0
        %640 = vmatprep.subr.mxu0 0.0
        %641 = vmatpush2.msra.mxu0 0.0
        %642 = vmatprep.subr.mxu0 0.0
        %643 = vmatpush2.msra.mxu0 0.0
        %644 = vmatprep.subr.mxu0 0.0
        %645 = vmatpush2.msra.mxu0 0.0
        %646 = vmatprep.subr.mxu0 0.0
        %647 = vmatpush2.msra.mxu0 0.0
        %648 = vmatprep.subr.mxu0 0.0
        %649 = vmatpush2.msra.mxu0 0.0
        %650 = vmatprep.subr.mxu0 0.0
        %651 = vmatpush2.msra.mxu0 0.0
        %652 = vmatprep.mubr.f32.mxu0 0.0
        %653 = vmatmul.mubr.f32.gmra.mxu0 %v435
        %v654 = vpop.f32.mrf.mxu0
        %v655 = vadd.f32 0.0, %v654
        %v656 = vpop.f32.mrf.mxu0
        %v657 = vadd.f32 0.0, %v656
        %658 = vdwg.mxu0
        %vm659 = vcmask 261120
        %v661 = vsel %vm659, %v434, 0
        %663 = vmatprep.subr.mxu0 0.0
        %664 = vmatpush1.msra.mxu0 0.0
        %665 = vmatprep.subr.mxu0 0.0
        %666 = vmatpush1.msra.mxu0 0.0
        %667 = vmatprep.subr.mxu0 0.0
        %668 = vmatpush1.msra.mxu0 0.0
        %669 = vmatprep.subr.mxu0 0.0
        %670 = vmatpush1.msra.mxu0 0.0
        %671 = vmatprep.subr.mxu0 0.0
        %672 = vmatpush1.msra.mxu0 0.0
        %673 = vmatprep.subr.mxu0 0.0
        %674 = vmatpush1.msra.mxu0 0.0
        %675 = vmatprep.subr.mxu0 0.0
        %676 = vmatpush1.msra.mxu0 0.0
        %677 = vmatprep.subr.mxu0 0.0
        %678 = vmatpush1.msra.mxu0 0.0
        %679 = vmatprep.subr.mxu0 0.0
        %680 = vmatpush1.msra.mxu0 0.0
        %681 = vmatprep.subr.mxu0 0.0
        %682 = vmatpush1.msra.mxu0 0.0
        %683 = vmatprep.subr.mxu0 0.0
        %684 = vmatpush1.msra.mxu0 0.0
        %685 = vmatprep.subr.mxu0 0.0
        %686 = vmatpush1.msra.mxu0 0.0
        %687 = vmatprep.subr.mxu0 %v450
        %688 = vmatpush1.msra.mxu0 %v449
        %689 = vmatprep.subr.mxu0 %v446
        %690 = vmatpush1.msra.mxu0 %v445
        %691 = vmatprep.subr.mxu0 %v442
        %692 = vmatpush1.msra.mxu0 %v441
        %693 = vmatprep.subr.mxu0 %v438
        %694 = vmatpush1.msra.mxu0 %v437
        %695 = vmatprep.subr.mxu0 0.0
        %696 = vmatpush2.msra.mxu0 0.0
        %697 = vmatprep.subr.mxu0 0.0
        %698 = vmatpush2.msra.mxu0 0.0
        %699 = vmatprep.subr.mxu0 0.0
        %700 = vmatpush2.msra.mxu0 0.0
        %701 = vmatprep.subr.mxu0 0.0
        %702 = vmatpush2.msra.mxu0 0.0
        %703 = vmatprep.subr.mxu0 0.0
        %704 = vmatpush2.msra.mxu0 0.0
        %705 = vmatprep.subr.mxu0 0.0
        %706 = vmatpush2.msra.mxu0 0.0
        %707 = vmatprep.subr.mxu0 0.0
        %708 = vmatpush2.msra.mxu0 0.0
        %709 = vmatprep.subr.mxu0 0.0
        %710 = vmatpush2.msra.mxu0 0.0
        %711 = vmatprep.subr.mxu0 0.0
        %712 = vmatpush2.msra.mxu0 0.0
        %713 = vmatprep.subr.mxu0 0.0
        %714 = vmatpush2.msra.mxu0 0.0
        %715 = vmatprep.subr.mxu0 0.0
        %716 = vmatpush2.msra.mxu0 0.0
        %717 = vmatprep.subr.mxu0 0.0
        %718 = vmatpush2.msra.mxu0 0.0
        %719 = vmatprep.subr.mxu0 0.0
        %720 = vmatpush2.msra.mxu0 0.0
        %721 = vmatprep.subr.mxu0 0.0
        %722 = vmatpush2.msra.mxu0 0.0
        %723 = vmatprep.subr.mxu0 0.0
        %724 = vmatpush2.msra.mxu0 0.0
        %725 = vmatprep.subr.mxu0 0.0
        %726 = vmatpush2.msra.mxu0 0.0
        %727 = vmatprep.mubr.f32.mxu0 0.0
        %728 = vmatmul.mubr.f32.gmra.mxu0 %v661
        %v729 = vpop.f32.mrf.mxu0
        %v730 = vadd.f32 %v584, %v729
        %v731 = vpop.f32.mrf.mxu0
        %v732 = vadd.f32 %v586, %v731
        %733 = vdwg.mxu0
        %734 = vmatprep.subr.mxu0 0.0
        %735 = vmatpush1.msra.mxu0 0.0
        %736 = vmatprep.subr.mxu0 0.0
        %737 = vmatpush1.msra.mxu0 0.0
        %738 = vmatprep.subr.mxu0 0.0
        %739 = vmatpush1.msra.mxu0 0.0
        %740 = vmatprep.subr.mxu0 0.0
        %741 = vmatpush1.msra.mxu0 0.0
        %742 = vmatprep.subr.mxu0 0.0
        %743 = vmatpush1.msra.mxu0 0.0
        %744 = vmatprep.subr.mxu0 0.0
        %745 = vmatpush1.msra.mxu0 0.0
        %746 = vmatprep.subr.mxu0 0.0
        %747 = vmatpush1.msra.mxu0 0.0
        %748 = vmatprep.subr.mxu0 0.0
        %749 = vmatpush1.msra.mxu0 0.0
        %750 = vmatprep.subr.mxu0 0.0
        %751 = vmatpush1.msra.mxu0 0.0
        %752 = vmatprep.subr.mxu0 0.0
        %753 = vmatpush1.msra.mxu0 0.0
        %754 = vmatprep.subr.mxu0 0.0
        %755 = vmatpush1.msra.mxu0 0.0
        %756 = vmatprep.subr.mxu0 0.0
        %757 = vmatpush1.msra.mxu0 0.0
        %758 = vmatprep.subr.mxu0 %v452
        %759 = vmatpush1.msra.mxu0 %v451
        %760 = vmatprep.subr.mxu0 %v448
        %761 = vmatpush1.msra.mxu0 %v447
        %762 = vmatprep.subr.mxu0 %v444
        %763 = vmatpush1.msra.mxu0 %v443
        %764 = vmatprep.subr.mxu0 %v440
        %765 = vmatpush1.msra.mxu0 %v439
        %766 = vmatprep.subr.mxu0 0.0
        %767 = vmatpush2.msra.mxu0 0.0
        %768 = vmatprep.subr.mxu0 0.0
        %769 = vmatpush2.msra.mxu0 0.0
        %770 = vmatprep.subr.mxu0 0.0
        %771 = vmatpush2.msra.mxu0 0.0
        %772 = vmatprep.subr.mxu0 0.0
        %773 = vmatpush2.msra.mxu0 0.0
        %774 = vmatprep.subr.mxu0 0.0
        %775 = vmatpush2.msra.mxu0 0.0
        %776 = vmatprep.subr.mxu0 0.0
        %777 = vmatpush2.msra.mxu0 0.0
        %778 = vmatprep.subr.mxu0 0.0
        %779 = vmatpush2.msra.mxu0 0.0
        %780 = vmatprep.subr.mxu0 0.0
        %781 = vmatpush2.msra.mxu0 0.0
        %782 = vmatprep.subr.mxu0 0.0
        %783 = vmatpush2.msra.mxu0 0.0
        %784 = vmatprep.subr.mxu0 0.0
        %785 = vmatpush2.msra.mxu0 0.0
        %786 = vmatprep.subr.mxu0 0.0
        %787 = vmatpush2.msra.mxu0 0.0
        %788 = vmatprep.subr.mxu0 0.0
        %789 = vmatpush2.msra.mxu0 0.0
        %790 = vmatprep.subr.mxu0 0.0
        %791 = vmatpush2.msra.mxu0 0.0
        %792 = vmatprep.subr.mxu0 0.0
        %793 = vmatpush2.msra.mxu0 0.0
        %794 = vmatprep.subr.mxu0 0.0
        %795 = vmatpush2.msra.mxu0 0.0
        %796 = vmatprep.subr.mxu0 0.0
        %797 = vmatpush2.msra.mxu0 0.0
        %798 = vmatprep.mubr.f32.mxu0 0.0
        %799 = vmatmul.mubr.f32.gmra.mxu0 %v661
        %v800 = vpop.f32.mrf.mxu0
        %v801 = vadd.f32 %v655, %v800
        %v802 = vpop.f32.mrf.mxu0
        %v803 = vadd.f32 %v657, %v802
        %804 = vdwg.mxu0
        %v805 = vld [vmem:[%s5] sm:$0xf]
        %v807 = vlaneseq
        %v808 = vshrl.u32 %v807, 7
        %v809 = vsub.s32 0, %v808
        %v810 = vrot.slane %v805, %v809
        %v811 = vlaneseq
        %v812 = vshrl.u32 %v811, 7
        %v813 = vsub.s32 1, %v812
        %v814 = vrot.slane %v805, %v813
        %v815 = vlaneseq
        %v816 = vshrl.u32 %v815, 7
        %v817 = vsub.s32 2, %v816
        %v818 = vrot.slane %v805, %v817
        %v819 = vlaneseq
        %v820 = vshrl.u32 %v819, 7
        %v821 = vsub.s32 3, %v820
        %v822 = vrot.slane %v805, %v821
        %v827 = vadd.f32 %v730, %v810
        %v828 = vadd.f32 %v732, %v814
        %v829 = vadd.f32 %v801, %v818
        %v830 = vadd.f32 %v803, %v822
        %v831 = vxor.u32 %v827, 2147483648
        %v832 = vmul.f32 %v831, 1.442695
        %v833 = vpow.pop %v832
        %v834 = vadd.f32 %v833, 1.0
        %v835 = vrcp.pop %v834
        %v836 = vmul.f32 1.0, %v835
        %v837 = vxor.u32 %v828, 2147483648
        %v838 = vmul.f32 %v837, 1.442695
        %v839 = vpow.pop %v838
        %v840 = vadd.f32 %v839, 1.0
        %v841 = vrcp.pop %v840
        %v842 = vmul.f32 1.0, %v841
        %v843 = vtanh.pop %v829
        %v844 = vxor.u32 %v830, 2147483648
        %v845 = vmul.f32 %v844, 1.442695
        %v846 = vpow.pop %v845
        %v847 = vadd.f32 %v846, 1.0
        %v848 = vrcp.pop %v847
        %v849 = vmul.f32 1.0, %v848
        %v850 = vmul.f32 %v842, %v436
        %v851 = vmul.f32 %v836, %v843
        %v852 = vadd.f32 %v850, %v851
        %v853 = vtanh.pop %v852
        %v854 = vmul.f32 %v849, %v853
        %855 = vst [vmem:[#allocation13] sm:$0xff] %v854
        %856 = vst [vmem:[#allocation15] sm:$0xff] %v852
        %v857 = vld [vmem:[%s6] sm:$0x1]
        %v859 = vlaneseq
        %v860 = vshrl.u32 %v859, 7
        %v861 = vsub.s32 0, %v860
        %v862 = vrot.slane %v857, %v861
        %v864 = vmul.f32 %v854, %v862
        %865 = vadd.xlane.f32.xlu0 %v864
        %v866 = vpop.xlane.xlu0 %865
        %s867 = sld [smem:[#allocation2]]
        %v868 = vstv %s867
        %v869 = vadd.f32 %v866, %v868
        %v870 = vxor.u32 %v869, 2147483648
        %v871 = vmul.f32 %v870, 1.442695
        %v872 = vpow.pop %v871
        %v873 = vadd.f32 %v872, 1.0
        %v874 = vrcp.pop %v873
        %v875 = vmul.f32 1.0, %v874
        %876 = vst [vmem:[%s421] sm:$0xff] %v875
        %s877 = sand.u32 %s213, 1
        %s878 = scalar_lea.sflag [#allocation5], %s877
        %s879 = sand.u32 %s213, 1
        %s880 = smul.addr %s879, 8
        %s881 = scalar_lea.vmem [#allocation12], %s880
        // Predicated region
        $region77: #{tpu_custom_call.1} parent=51 // pred_check
          %p882 = pneg %p223
        $region78: #{tpu_custom_call.1} parent=51 // pred_check_branch
          %884 = sbr.rel (%p882) target = $region80
        $region79: #{tpu_custom_call.1} parent=51 // pred_region
          %s886 = ssub.s32 128, 128
          %887 = vsyncadd %s878, %s886
          %s888 = smul.addr %s32, 128
          %s889 = scalar_lea.hbm %s8, %s888
          %s891 = sshll.u32 %s881, 4
          %s892 = int_to_ptr.vmem [resolvable:$true] %s891
          %894 = dma.vmem_to_hbm [thread:$0]  %s892, 128, %s889, %s878
        $region80: #{tpu_custom_call.1} parent=51 // pred_fallthru
          _
        // Predicated region
        $region81: #{tpu_custom_call.1} parent=51 // pred_check
          %p895 = pneg %p244
        $region82: #{tpu_custom_call.1} parent=51 // pred_check_branch
          %897 = sbr.rel (%p895) target = $region84
        $region83: #{tpu_custom_call.1} parent=51 // pred_region
          %s899 = ssub.s32 128, 128
          %900 = vsyncadd [#allocation14], %s899
          %s902 = sshll.u32 [#allocation13], 4
          %s903 = int_to_ptr.vmem [resolvable:$true] %s902
          %905 = dma.vmem_to_hbm [thread:$0]  %s903, 128, %s9, [#allocation14]
        $region84: #{tpu_custom_call.1} parent=51 // pred_fallthru
          _
        // Predicated region
        $region85: #{tpu_custom_call.1} parent=51 // pred_check
          %p906 = pneg %p265
        $region86: #{tpu_custom_call.1} parent=51 // pred_check_branch
          %908 = sbr.rel (%p906) target = $region88
        $region87: #{tpu_custom_call.1} parent=51 // pred_region
          %s910 = ssub.s32 128, 128
          %911 = vsyncadd [#allocation14], %s910
          %s913 = sshll.u32 [#allocation15], 4
          %s914 = int_to_ptr.vmem [resolvable:$true] %s913
          %916 = dma.vmem_to_hbm [thread:$0]  %s914, 128, %s10, [#allocation14]
        $region88: #{tpu_custom_call.1} parent=51 // pred_fallthru
          _
        // Predicated region
        $region89: #{tpu_custom_call.1} parent=51 // pred_check
          %p917 = pneg %p244
        $region90: #{tpu_custom_call.1} parent=51 // pred_check_branch
          %919 = sbr.rel (%p917) target = $region92
        $region91: #{tpu_custom_call.1} parent=51 // pred_region
          %920 = dma.done [#allocation14], 128
        $region92: #{tpu_custom_call.1} parent=51 // pred_fallthru
          _
        // Predicated region
        $region93: #{tpu_custom_call.1} parent=51 // pred_check
          %p921 = pneg %p265
        $region94: #{tpu_custom_call.1} parent=51 // pred_check_branch
          %923 = sbr.rel (%p921) target = $region96
        $region95: #{tpu_custom_call.1} parent=51 // pred_region
          %924 = dma.done [#allocation14], 128
        $region96: #{tpu_custom_call.1} parent=51 // pred_fallthru
          _
      $region52: #{tpu_custom_call.1} parent=5 // pred_fallthru
        _
      %p925 = scmp.le.s32.totalorder 2, %s27
      // Predicated region
      $region97: #{tpu_custom_call.1} parent=5 // pred_check
        %p926 = pneg %p925
      $region98: #{tpu_custom_call.1} parent=5 // pred_check_branch
        %928 = sbr.rel (%p926) target = $region100
      $region99: #{tpu_custom_call.1} parent=5 // pred_region
        %s929 = ssub.s32 %s27, 2
        // Predicated region
        $region101: #{tpu_custom_call.1} parent=99 // pred_check
          %p930 = pneg %p229
        $region102: #{tpu_custom_call.1} parent=99 // pred_check_branch
          %932 = sbr.rel (%p930) target = $region104
        $region103: #{tpu_custom_call.1} parent=99 // pred_region
          %s933 = sand.u32 %s214, 1
          %s934 = scalar_lea.sflag [#allocation5], %s933
          %s935 = sand.u32 %s214, 1
          %s936 = smul.addr %s935, 8
          %s937 = scalar_lea.vmem [#allocation12], %s936
          %938 = dma.done %s934, 128
        $region104: #{tpu_custom_call.1} parent=99 // pred_fallthru
          _
      $region100: #{tpu_custom_call.1} parent=5 // pred_fallthru
        _
    $region6: #{tpu_custom_call.1} parent=1 // loop_footer
      %s31 = sadd.s32 1, %s27
    $region7: #{tpu_custom_call.1} parent=1 // loop_footer_branch
      %26 = sbr.rel target = $region3
    $region8: #{tpu_custom_call.1} parent=1 // loop_exit
      _
    %939 = vsyncpa [#allocation4], 1
    %s940 = scalar_lea.sflag [#allocation4], 1
    %941 = vsyncpa %s940, 1
    %942 = vsyncpa [#allocation7], 1
    %943 = vsyncpa [#allocation10], 1
    %944 = vsyncpa [#allocation5], 1
    %s945 = scalar_lea.sflag [#allocation5], 1
    %946 = vsyncpa %s945, 1
    %947 = vsyncpa [#allocation14], 1

</llo_original>
